<compile_context>
chip_gen: v7x
topology: tpu7x:2x2x1
jax: 0.10.0
libtpu: 0.0.40
codegen_flags: <defaults>
</compile_context>

<pallas_src>
import functools

import jax
import jax.numpy as jnp
from jax import lax
from jax.experimental import pallas as pl
from jax.experimental.pallas import tpu as pltpu

LANES = 128
SUB = 8                                # f32 sublanes per vreg
TARGET_BLOCK_BYTES = 4 * 1024 * 1024   # ~4 MiB HBM per input block per step


def _wmape_kernel(x_ref, t_ref, num_out, den_out, *,
                  rows, rows_per_tile, tiles_per_split, exact):
    p = pl.program_id(0)   # optional core-parallel split (v7x megacore)
    j = pl.program_id(1)   # sequential reduction over row tiles
    tile = p * tiles_per_split + j

    # Output blocks are resident across the reduction axis (their index_map
    # ignores j), so accumulate straight into them; init on the first step.
    @pl.when(j == 0)
    def _():
        num_out[...] = jnp.zeros_like(num_out)
        den_out[...] = jnp.zeros_like(den_out)

    x = x_ref[...].astype(jnp.float32)
    t = t_ref[...].astype(jnp.float32)
    abs_diff = jnp.abs(x - t)
    abs_x = jnp.abs(x)

    def accumulate(nd, dd):
        # Lane/sublane-parallel accumulation: elementwise VPU adds only; the
        # single cross-lane (XLU) reduction happens once in the epilogue.
        num_out[0] += nd.reshape(-1, SUB, LANES).sum(axis=0)
        den_out[0] += dd.reshape(-1, SUB, LANES).sum(axis=0)

    if exact:
        # Tiling divides the (padded) rows exactly: no mask anywhere.
        accumulate(abs_diff, abs_x)
    else:
        # Only the single ragged last tile takes the masked path; every full
        # tile stays on the unmasked, memory-bound path.
        tile_start = tile * rows_per_tile
        is_full = tile_start + rows_per_tile <= rows

        @pl.when(is_full)
        def _():
            accumulate(abs_diff, abs_x)

        @pl.when(jnp.logical_not(is_full))
        def _():
            row_ids = tile_start + lax.broadcasted_iota(
                jnp.int32, (rows_per_tile, LANES), 0)
            valid = row_ids < rows
            accumulate(jnp.where(valid, abs_diff, 0.0),
                       jnp.where(valid, abs_x, 0.0))


def wmape_loss(inputs, targets):
    assert inputs.shape == targets.shape
    x = jnp.ravel(inputs)
    t = jnp.ravel(targets)
    n = x.shape[0]
    itemsize = jnp.dtype(x.dtype).itemsize

    # Native sublane packing: 8 rows/vreg for 32-bit, 16 for 16-bit, 32 for
    # 8-bit dtypes.  Pad / tile in multiples of this.
    pack = SUB * max(1, 4 // itemsize)

    # Minimal alignment pad so the slab is (rows, 128) with rows % pack == 0.
    # Zero padding contributes 0 to both sums, so it needs no mask.  Skipped
    # entirely (no copy) for aligned sizes such as the test case.
    pad = (-n) % (pack * LANES)
    if pad:
        x = jnp.pad(x, (0, pad))
        t = jnp.pad(t, (0, pad))
    rows = (n + pad) // LANES
    x2 = x.reshape(rows, LANES)
    t2 = t.reshape(rows, LANES)

    # Dtype-aware tile: ~TARGET_BLOCK_BYTES per input block (8192 rows f32,
    # 16384 rows bf16), rounded to the packing granularity.
    rows_target = max(pack,
                      (TARGET_BLOCK_BYTES // (LANES * itemsize)) // pack * pack)
    rows_per_tile = min(rows_target, rows)
    total_tiles = pl.cdiv(rows, rows_per_tile)

    # Optional 2-way leading split for v7x's two TensorCores.  Only split when
    # the tile count divides exactly so single-TC chips (v5e/v6e) pay zero
    # clamp / mask / extra-DMA overhead and no tile is ever fetched twice.
    nsplit = 2 if (total_tiles >= 2 and total_tiles % 2 == 0) else 1
    tiles_per_split = total_tiles // nsplit
    exact = total_tiles * rows_per_tile == rows

    def in_map(pi, ji):
        return (pi * tiles_per_split + ji, 0)

    kernel = functools.partial(
        _wmape_kernel,
        rows=rows,
        rows_per_tile=rows_per_tile,
        tiles_per_split=tiles_per_split,
        exact=exact,
    )

    cost = pl.CostEstimate(
        flops=5 * (n + pad),
        transcendentals=0,
        bytes_accessed=2 * (n + pad) * itemsize + 2 * nsplit * SUB * LANES * 4,
    )

    num_p, den_p = pl.pallas_call(
        kernel,
        out_shape=(
            jax.ShapeDtypeStruct((nsplit, SUB, LANES), jnp.float32),
            jax.ShapeDtypeStruct((nsplit, SUB, LANES), jnp.float32),
        ),
        grid_spec=pltpu.PrefetchScalarGridSpec(
            num_scalar_prefetch=0,
            grid=(nsplit, tiles_per_split),
            in_specs=[
                pl.BlockSpec((rows_per_tile, LANES), in_map),
                pl.BlockSpec((rows_per_tile, LANES), in_map),
            ],
            out_specs=(
                pl.BlockSpec((1, SUB, LANES), lambda pi, ji: (pi, 0, 0)),
                pl.BlockSpec((1, SUB, LANES), lambda pi, ji: (pi, 0, 0)),
            ),
        ),
        compiler_params=pltpu.CompilerParams(
            dimension_semantics=("parallel", "arbitrary"),
            # 2 inputs x 2 buffers x ~4 MiB + outputs fits comfortably in
            # 32 MiB on every generation (v5e default is only 16 MiB).
            vmem_limit_bytes=32 * 1024 * 1024,
        ),
        cost_estimate=cost,
    )(x2, t2)

    # Single final cross-lane reduction + exact divide (tiny epilogue).
    # Note: sum(|inputs|)==0 gives inf/nan, matching the PyTorch reference.
    return jnp.sum(num_p) / jnp.sum(den_p)


if __name__ == "__main__":
    key = jax.random.PRNGKey(0)
    k1, k2 = jax.random.split(key)
    inputs = jax.random.normal(k1, (2, 4, 16, 16), dtype=jnp.float32)
    targets = jax.random.normal(k2, (2, 4, 16, 16), dtype=jnp.float32)

    loss = wmape_loss(inputs, targets)
    jax.block_until_ready(loss)

    # Reference check (plain JAX).  f32 reduction-order differences between
    # the lane-parallel kernel sum and XLA's reduce are O(1e-6) relative; any
    # real semantic bug would be orders of magnitude larger.
    ref = jnp.sum(jnp.abs(inputs - targets)) / jnp.sum(jnp.abs(inputs))
    assert jnp.allclose(loss, ref, rtol=1e-4, atol=1e-6), (loss, ref)

    print("KERNEL_OK")
</pallas_src>

<mosaic_0001>
module attributes {stable_mosaic.version = 11 : i64} {
  func.func @_wmape_kernel(%arg0: i32, %arg1: i32, %arg2: memref<16x128xf32, #tpu.memory_space<vmem>>, %arg3: memref<16x128xf32, #tpu.memory_space<vmem>>, %arg4: memref<1x8x128xf32, #tpu.memory_space<vmem>>, %arg5: memref<1x8x128xf32, #tpu.memory_space<vmem>>) attributes {dimension_semantics = [#tpu.dimension_semantics<parallel>, #tpu.dimension_semantics<arbitrary>], iteration_bounds = array<i64: 1, 1>, scalar_prefetch = 0 : i64, scratch_operands = 0 : i64, tpu.core_type = #tpu.core_type<tc>, window_params = [{transform_indices = @transform_0, window_bounds = array<i64: 16, 128>}, {transform_indices = @transform_1, window_bounds = array<i64: 16, 128>}, {transform_indices = @transform_2, window_bounds = array<i64: 1, 8, 128>}, {transform_indices = @transform_3, window_bounds = array<i64: 1, 8, 128>}]} {
    %c0_i32 = arith.constant 0 : i32
    %0 = arith.cmpi eq, %arg1, %c0_i32 : i32
    %1 = arith.extui %0 : i1 to i32
    %c0_i32_0 = arith.constant 0 : i32
    %2 = arith.cmpi ne, %1, %c0_i32_0 : i32
    scf.if %2 {
      %cst_17 = arith.constant 0.000000e+00 : f32
      %24 = vector.broadcast %cst_17 : f32 to vector<1x8x128xf32>
      %c0_18 = arith.constant 0 : index
      %c0_19 = arith.constant 0 : index
      %c0_20 = arith.constant 0 : index
      %25 = vector.load %arg4[%c0_18, %c0_19, %c0_20] : memref<1x8x128xf32, #tpu.memory_space<vmem>>, vector<1x8x128xf32>
      tpu.vector_store %arg4[%c0_18, %c0_19, %c0_20], %24 {strides = array<i32>} : memref<1x8x128xf32, #tpu.memory_space<vmem>>, vector<1x8x128xf32>,
      %cst_21 = arith.constant 0.000000e+00 : f32
      %26 = vector.broadcast %cst_21 : f32 to vector<1x8x128xf32>
      %c0_22 = arith.constant 0 : index
      %c0_23 = arith.constant 0 : index
      %c0_24 = arith.constant 0 : index
      %27 = vector.load %arg5[%c0_22, %c0_23, %c0_24] : memref<1x8x128xf32, #tpu.memory_space<vmem>>, vector<1x8x128xf32>
      tpu.vector_store %arg5[%c0_22, %c0_23, %c0_24], %26 {strides = array<i32>} : memref<1x8x128xf32, #tpu.memory_space<vmem>>, vector<1x8x128xf32>,
    } else {
    }
    %c0 = arith.constant 0 : index
    %c0_1 = arith.constant 0 : index
    %3 = vector.load %arg2[%c0, %c0_1] : memref<16x128xf32, #tpu.memory_space<vmem>>, vector<16x128xf32>
    %c0_2 = arith.constant 0 : index
    %c0_3 = arith.constant 0 : index
    %4 = vector.load %arg3[%c0_2, %c0_3] : memref<16x128xf32, #tpu.memory_space<vmem>>, vector<16x128xf32>
    %5 = arith.subf %3, %4 : vector<16x128xf32>
    %6 = math.absf %5 : vector<16x128xf32>
    %7 = math.absf %3 : vector<16x128xf32>
    %c0_4 = arith.constant 0 : index
    %c0_5 = arith.constant 0 : index
    %c0_6 = arith.constant 0 : index
    %8 = vector.load %arg4[%c0_4, %c0_5, %c0_6] : memref<1x8x128xf32, #tpu.memory_space<vmem>>, vector<1x8x128xf32>
    %9 = vector.shape_cast %8 : vector<1x8x128xf32> to vector<8x128xf32>
    %10 = vector.shape_cast %6 : vector<16x128xf32> to vector<2x8x128xf32>
    %cst = arith.constant dense<0.000000e+00> : vector<8x128xf32>
    %11 = vector.multi_reduction <add>, %10, %cst [0] : vector<2x8x128xf32> to vector<8x128xf32>
    %12 = arith.addf %9, %11 : vector<8x128xf32>
    %c0_7 = arith.constant 0 : index
    %c0_8 = arith.constant 0 : index
    %c0_9 = arith.constant 0 : index
    %13 = vector.load %arg4[%c0_7, %c0_8, %c0_9] : memref<1x8x128xf32, #tpu.memory_space<vmem>>, vector<1x8x128xf32>
    %14 = vector.shape_cast %13 : vector<1x8x128xf32> to vector<8x128xf32>
    %15 = vector.shape_cast %12 : vector<8x128xf32> to vector<1x8x128xf32>
    tpu.vector_store %arg4[%c0_7, %c0_8, %c0_9], %15 {strides = array<i32>} : memref<1x8x128xf32, #tpu.memory_space<vmem>>, vector<1x8x128xf32>,
    %c0_10 = arith.constant 0 : index
    %c0_11 = arith.constant 0 : index
    %c0_12 = arith.constant 0 : index
    %16 = vector.load %arg5[%c0_10, %c0_11, %c0_12] : memref<1x8x128xf32, #tpu.memory_space<vmem>>, vector<1x8x128xf32>
    %17 = vector.shape_cast %16 : vector<1x8x128xf32> to vector<8x128xf32>
    %18 = vector.shape_cast %7 : vector<16x128xf32> to vector<2x8x128xf32>
    %cst_13 = arith.constant dense<0.000000e+00> : vector<8x128xf32>
    %19 = vector.multi_reduction <add>, %18, %cst_13 [0] : vector<2x8x128xf32> to vector<8x128xf32>
    %20 = arith.addf %17, %19 : vector<8x128xf32>
    %c0_14 = arith.constant 0 : index
    %c0_15 = arith.constant 0 : index
    %c0_16 = arith.constant 0 : index
    %21 = vector.load %arg5[%c0_14, %c0_15, %c0_16] : memref<1x8x128xf32, #tpu.memory_space<vmem>>, vector<1x8x128xf32>
    %22 = vector.shape_cast %21 : vector<1x8x128xf32> to vector<8x128xf32>
    %23 = vector.shape_cast %20 : vector<8x128xf32> to vector<1x8x128xf32>
    tpu.vector_store %arg5[%c0_14, %c0_15, %c0_16], %23 {strides = array<i32>} : memref<1x8x128xf32, #tpu.memory_space<vmem>>, vector<1x8x128xf32>,
    return
  }
  func.func @transform_0(%arg0: i32, %arg1: i32) -> (i32, i32) {
    %c1_i32 = arith.constant 1 : i32
    %0 = arith.muli %arg0, %c1_i32 : i32
    %1 = arith.addi %0, %arg1 : i32
    %c0_i32 = arith.constant 0 : i32
    %c0_i32_0 = arith.constant 0 : i32
    return %1, %c0_i32 : i32, i32
  }
  func.func @transform_1(%arg0: i32, %arg1: i32) -> (i32, i32) {
    %c1_i32 = arith.constant 1 : i32
    %0 = arith.muli %arg0, %c1_i32 : i32
    %1 = arith.addi %0, %arg1 : i32
    %c0_i32 = arith.constant 0 : i32
    %c0_i32_0 = arith.constant 0 : i32
    return %1, %c0_i32 : i32, i32
  }
  func.func @transform_2(%arg0: i32, %arg1: i32) -> (i32, i32, i32) {
    %c0_i32 = arith.constant 0 : i32
    %c0_i32_0 = arith.constant 0 : i32
    %c0_i32_1 = arith.constant 0 : i32
    return %arg0, %c0_i32, %c0_i32_0 : i32, i32, i32
  }
  func.func @transform_3(%arg0: i32, %arg1: i32) -> (i32, i32, i32) {
    %c0_i32 = arith.constant 0 : i32
    %c0_i32_0 = arith.constant 0 : i32
    %c0_i32_1 = arith.constant 0 : i32
    return %arg0, %c0_i32, %c0_i32_0 : i32, i32, i32
  }
}

</mosaic_0001>

<llo_original>
// kernel: tpu_custom_call.1
$region0: #{tpu_custom_call.1}
  #allocation0 [shape = 'u32[]', space=smem, size = 0x4, offset = 0x4, fixed_abs, tag = 'smem constant byte address 0x4 - core index']
  #allocation1 [shape = 'u32[144,128]{1,0:T(1,128)}', space=vmem, size = 0x12000, scoped, tag = 'internal scratch']
  %s0 = inlined_call_operand.hbm [shape: f32[16,128], index: 0, kind: input, shape index: {}]
  %s1 = inlined_call_operand.hbm [shape: f32[16,128], index: 1, kind: input, shape index: {}]
  %s2 = inlined_call_operand.hbm [shape: f32[1,8,128], index: 2, kind: output, shape index: {0}]
  %s3 = inlined_call_operand.hbm [shape: f32[1,8,128], index: 3, kind: output, shape index: {1}]
  %4 = xla_tuple %s2, %s3
  %s5 = sld [smem:[#allocation0]]
  $region38: #{tpu_custom_call.1} parent=0
    _
  %s7 = ssub.s32 1, %s5
  %s8 = scalar_select 0, %s7, %s5
  $region1: #{tpu_custom_call.1} parent=0
    #allocation2 [shape = 'u8[8192]{0}', space=vmem, size = 0x2000, scoped, tag = 'input window, operand 0, single buffered']
    #allocation3 [shape = 's32[1]{0}', space=sflag, size = 0x4, scoped, tag = 'scoped memory for tpu_custom_call.1']
    #allocation4 [shape = 's32[1]{0}', space=sflag, size = 0x4, scoped, tag = 'scoped memory for tpu_custom_call.1']
    #allocation5 [shape = 'u8[8192]{0}', space=vmem, size = 0x2000, scoped, tag = 'input window, operand 1, single buffered']
    #allocation6 [shape = 's32[1]{0}', space=sflag, size = 0x4, scoped, tag = 'scoped memory for tpu_custom_call.1']
    #allocation7 [shape = 'u8[4096]{0}', space=vmem, size = 0x1000, scoped, tag = 'output window, operand 0, single buffered']
    #allocation8 [shape = 'u8[4096]{0}', space=vmem, size = 0x1000, scoped, tag = 'output window, operand 1, single buffered']
    #allocation9 [shape = 's32[1]{0}', space=sflag, size = 0x4, scoped, tag = 'scoped memory for tpu_custom_call.1']
    %9 = vsyncpa [#allocation3], 0
    %10 = vsyncpa [#allocation6], 0
    %11 = vsyncpa [#allocation4], 0
    %12 = vsyncpa [#allocation9], 0
    // Predicated region
    $region2: #{tpu_custom_call.1} parent=1 // pred_check
      _
    $region3: #{tpu_custom_call.1} parent=1 // pred_check_branch
      %14 = sbr.rel (0) target = $region5
    $region4: #{tpu_custom_call.1} parent=1 // pred_region
      %s15 = sadd.s32 0, 0
      %s16 = smul.u32 2, %s15
      %s18 = ssub.s32 256, 256
      %19 = vsyncadd [#allocation3], %s18
      %s20 = smul.addr %s16, 128
      %s21 = scalar_lea.hbm %s0, %s20
      %s22 = sshll.u32 [#allocation2], 4
      %s23 = int_to_ptr.vmem [resolvable:$true] %s22
      %28 = dma.hbm_to_vmem [thread:$0]  %s21, 256, %s23, [#allocation3], 128, 128, 8
    $region5: #{tpu_custom_call.1} parent=1 // pred_fallthru
      _
    // Predicated region
    $region6: #{tpu_custom_call.1} parent=1 // pred_check
      _
    $region7: #{tpu_custom_call.1} parent=1 // pred_check_branch
      %30 = sbr.rel (0) target = $region9
    $region8: #{tpu_custom_call.1} parent=1 // pred_region
      %s31 = sadd.s32 0, 0
      %s32 = smul.u32 2, %s31
      %s34 = ssub.s32 256, 256
      %35 = vsyncadd [#allocation6], %s34
      %s36 = smul.addr %s32, 128
      %s37 = scalar_lea.hbm %s1, %s36
      %s38 = sshll.u32 [#allocation5], 4
      %s39 = int_to_ptr.vmem [resolvable:$true] %s38
      %44 = dma.hbm_to_vmem [thread:$0]  %s37, 256, %s39, [#allocation6], 128, 128, 8
    $region9: #{tpu_custom_call.1} parent=1 // pred_fallthru
      _
    // Predicated region
    $region10: #{tpu_custom_call.1} parent=1 // pred_check
      _
    $region11: #{tpu_custom_call.1} parent=1 // pred_check_branch
      %46 = sbr.rel (0) target = $region13
    $region12: #{tpu_custom_call.1} parent=1 // pred_region
      %47 = dma.done [#allocation3], 256
    $region13: #{tpu_custom_call.1} parent=1 // pred_fallthru
      _
    // Predicated region
    $region14: #{tpu_custom_call.1} parent=1 // pred_check
      _
    $region15: #{tpu_custom_call.1} parent=1 // pred_check_branch
      %49 = sbr.rel (0) target = $region17
    $region16: #{tpu_custom_call.1} parent=1 // pred_region
      %50 = dma.done [#allocation6], 256
    $region17: #{tpu_custom_call.1} parent=1 // pred_fallthru
      _
    %s51 = sadd.s32 0, 0
    %s52 = smul.u32 2, %s51
    %s53 = sadd.s32 0, 0
    %s54 = smul.u32 2, %s53
    %p55 = scmp.eq.s32.totalorder 0, 0
    // Predicated region
    $region18: #{tpu_custom_call.1} parent=1 // pred_check
      %p56 = pneg %p55
    $region19: #{tpu_custom_call.1} parent=1 // pred_check_branch
      %58 = sbr.rel (%p56) target = $region21
    $region20: #{tpu_custom_call.1} parent=1 // pred_region
      %59 = vst [vmem:[#allocation7] sm:$0xff] 0.0
      %60 = vst [vmem:[#allocation8] sm:$0xff] 0.0
    $region21: #{tpu_custom_call.1} parent=1 // pred_fallthru
      _
    %v61 = vld [vmem:[#allocation2] sm:$0xff]
    %v62 = vld [vmem:[#allocation2 + $0x8] sm:$0xff]
    %v63 = vld [vmem:[#allocation5] sm:$0xff]
    %v64 = vld [vmem:[#allocation5 + $0x8] sm:$0xff]
    %v65 = vsub.f32 %v61, %v63
    %v66 = vsub.f32 %v62, %v64
    %v67 = vand.u32 2147483647, %v65
    %v68 = vand.u32 2147483647, %v66
    %v69 = vand.u32 2147483647, %v61
    %v70 = vand.u32 2147483647, %v62
    %v71 = vld [vmem:[#allocation7] sm:$0xff]
    %v72 = vadd.f32 %v67, %v68
    %v73 = vadd.f32 %v71, %v72
    %74 = vst [vmem:[#allocation7] sm:$0xff] %v73
    %v75 = vld [vmem:[#allocation8] sm:$0xff]
    %v76 = vadd.f32 %v69, %v70
    %v77 = vadd.f32 %v75, %v76
    %78 = vst [vmem:[#allocation8] sm:$0xff] %v77
    // Predicated region
    $region22: #{tpu_custom_call.1} parent=1 // pred_check
      _
    $region23: #{tpu_custom_call.1} parent=1 // pred_check_branch
      %80 = sbr.rel (0) target = $region25
    $region24: #{tpu_custom_call.1} parent=1 // pred_region
      %s82 = ssub.s32 128, 128
      %83 = vsyncadd [#allocation4], %s82
      %s85 = sshll.u32 [#allocation7], 4
      %s86 = int_to_ptr.vmem [resolvable:$true] %s85
      %88 = dma.vmem_to_hbm [thread:$0]  %s86, 128, %s2, [#allocation4]
    $region25: #{tpu_custom_call.1} parent=1 // pred_fallthru
      _
    // Predicated region
    $region26: #{tpu_custom_call.1} parent=1 // pred_check
      _
    $region27: #{tpu_custom_call.1} parent=1 // pred_check_branch
      %90 = sbr.rel (0) target = $region29
    $region28: #{tpu_custom_call.1} parent=1 // pred_region
      %s92 = ssub.s32 128, 128
      %93 = vsyncadd [#allocation9], %s92
      %s95 = sshll.u32 [#allocation8], 4
      %s96 = int_to_ptr.vmem [resolvable:$true] %s95
      %98 = dma.vmem_to_hbm [thread:$0]  %s96, 128, %s3, [#allocation9]
    $region29: #{tpu_custom_call.1} parent=1 // pred_fallthru
      _
    // Predicated region
    $region30: #{tpu_custom_call.1} parent=1 // pred_check
      _
    $region31: #{tpu_custom_call.1} parent=1 // pred_check_branch
      %100 = sbr.rel (0) target = $region33
    $region32: #{tpu_custom_call.1} parent=1 // pred_region
      %101 = dma.done [#allocation4], 128
    $region33: #{tpu_custom_call.1} parent=1 // pred_fallthru
      _
    // Predicated region
    $region34: #{tpu_custom_call.1} parent=1 // pred_check
      _
    $region35: #{tpu_custom_call.1} parent=1 // pred_check_branch
      %103 = sbr.rel (0) target = $region37
    $region36: #{tpu_custom_call.1} parent=1 // pred_region
      %104 = dma.done [#allocation9], 128
    $region37: #{tpu_custom_call.1} parent=1 // pred_fallthru
      _
    %105 = vsyncpa [#allocation3], 1
    %106 = vsyncpa [#allocation6], 1
    %107 = vsyncpa [#allocation4], 1
    %108 = vsyncpa [#allocation9], 1

</llo_original>
